<compile_context>
chip_gen: v7x
topology: tpu7x:2x2x1
jax: 0.10.0
libtpu: 0.0.40
codegen_flags: <defaults>
</compile_context>

<pallas_src>
import functools

import jax
import jax.numpy as jnp
from jax.experimental import pallas as pl
from jax.experimental.pallas import tpu as pltpu


LANE = 128                       # lane-dense feature / node padding
TILE_N = 256                     # adj row/col tile; 128-aligned, VMEM-friendly
_DOT_DTYPE = jnp.bfloat16        # MXU operand dtype (accumulation stays f32)
_VMEM_LIMIT = 32 * 1024 * 1024
_FUSED_VMEM_BUDGET = 20 * 1024 * 1024
_NEG = -1e30


# ------------------------------ small helpers ------------------------------

def _round_up(v, m):
    return (v + m - 1) // m * m


def _pad2(a, rows, cols):
    r, c = a.shape
    return jnp.pad(a, ((0, rows - r), (0, cols - c)))


def _full_spec(shape):
    # Single grid step, full-array block.
    return pl.BlockSpec(shape, lambda: (0,) * len(shape))


def _masked_log_softmax(logits, n_valid):
    """log_softmax over dim 1, ignoring padded class columns >= n_valid."""
    cols = jax.lax.broadcasted_iota(jnp.int32, logits.shape, dimension=1)
    x = jnp.where(cols < n_valid, logits, _NEG)
    m = jnp.max(x, axis=1, keepdims=True)
    shifted = x - m
    lse = jnp.log(jnp.sum(jnp.exp(shifted), axis=1, keepdims=True))
    return shifted - lse


# ----------------------------- Pallas kernels ------------------------------

def _gcn_fused_kernel(nclass, x_ref, adj_ref, w1_ref, b1_ref, w2_ref, b2_ref,
                      w3_ref, b3_ref, e1_ref, e2_ref, e3_ref, logp_ref):
    """All three graph convolutions + log_softmax in one kernel (small graphs)."""
    adj = adj_ref[...].astype(_DOT_DTYPE)

    def layer(h, w_ref, b_ref):
        s = jnp.dot(h.astype(_DOT_DTYPE), w_ref[...].astype(_DOT_DTYPE),
                    preferred_element_type=jnp.float32)
        return jnp.dot(adj, s.astype(_DOT_DTYPE),
                       preferred_element_type=jnp.float32) + b_ref[...]

    h1 = layer(x_ref[...], w1_ref, b1_ref)
    e1_ref[...] = h1.astype(e1_ref.dtype)

    h2 = layer(jnp.maximum(h1, 0.0), w2_ref, b2_ref)
    e2_ref[...] = h2.astype(e2_ref.dtype)

    h3 = layer(jnp.maximum(h2, 0.0), w3_ref, b3_ref)
    e3_ref[...] = h3.astype(e3_ref.dtype)

    logp_ref[...] = _masked_log_softmax(h3, nclass).astype(logp_ref.dtype)


def _support_kernel(apply_relu, x_ref, w_ref, o_ref):
    """support = (relu?)(x) @ W, computed once per row tile, stored bf16."""
    x = x_ref[...]
    if apply_relu:
        x = jnp.maximum(x, 0.0)
    o_ref[...] = jnp.dot(x.astype(_DOT_DTYPE), w_ref[...].astype(_DOT_DTYPE),
                         preferred_element_type=jnp.float32).astype(o_ref.dtype)


def _aggregate_kernel(nclass, with_logsoftmax, *refs):
    """out = adj @ support + b (tiled over adj), optional log_softmax epilogue."""
    if with_logsoftmax:
        adj_ref, s_ref, b_ref, out_ref, logp_ref, acc_ref = refs
    else:
        adj_ref, s_ref, b_ref, out_ref, acc_ref = refs
        logp_ref = None

    k = pl.program_id(1)

    @pl.when(k == 0)
    def _():
        acc_ref[...] = jnp.zeros_like(acc_ref)

    acc_ref[...] += jnp.dot(adj_ref[...].astype(_DOT_DTYPE),
                            s_ref[...].astype(_DOT_DTYPE),
                            preferred_element_type=jnp.float32)

    @pl.when(k == pl.num_programs(1) - 1)
    def _():
        out = acc_ref[...] + b_ref[...]
        out_ref[...] = out.astype(out_ref.dtype)
        if with_logsoftmax:
            logp_ref[...] = _masked_log_softmax(out, nclass).astype(logp_ref.dtype)


# ------------------------------ JAX wrappers -------------------------------

def _forward_fused(xp, adjp, pp, nclass):
    n_p, fin_p = xp.shape
    h_p = pp["w1"].shape[1]
    c_p = pp["w3"].shape[1]

    out_shape = (jax.ShapeDtypeStruct((n_p, h_p), jnp.float32),
                 jax.ShapeDtypeStruct((n_p, h_p), jnp.float32),
                 jax.ShapeDtypeStruct((n_p, c_p), jnp.float32),
                 jax.ShapeDtypeStruct((n_p, c_p), jnp.float32))

    flops = (2 * n_p * (fin_p * h_p + h_p * h_p + h_p * c_p)
             + 2 * n_p * n_p * (2 * h_p + c_p))
    bytes_accessed = 4 * (n_p * fin_p + fin_p * h_p + h_p * h_p + h_p * c_p
                          + 3 * h_p + 2 * n_p * h_p + 2 * n_p * c_p) + 2 * n_p * n_p

    return pl.pallas_call(
        functools.partial(_gcn_fused_kernel, nclass),
        out_shape=out_shape,
        in_specs=[_full_spec(xp.shape), _full_spec(adjp.shape),
                  _full_spec(pp["w1"].shape), _full_spec(pp["b1"].shape),
                  _full_spec(pp["w2"].shape), _full_spec(pp["b2"].shape),
                  _full_spec(pp["w3"].shape), _full_spec(pp["b3"].shape)],
        out_specs=tuple(_full_spec(s.shape) for s in out_shape),
        compiler_params=pltpu.CompilerParams(vmem_limit_bytes=_VMEM_LIMIT),
        cost_estimate=pl.CostEstimate(flops=flops, transcendentals=n_p * c_p,
                                      bytes_accessed=bytes_accessed),
    )(xp, adjp, pp["w1"], pp["b1"], pp["w2"], pp["b2"], pp["w3"], pp["b3"])


def _support(x, w, apply_relu):
    n_p, fin_p = x.shape
    fout_p = w.shape[1]
    tm = min(TILE_N, n_p)
    return pl.pallas_call(
        functools.partial(_support_kernel, apply_relu),
        out_shape=jax.ShapeDtypeStruct((n_p, fout_p), _DOT_DTYPE),
        grid=(n_p // tm,),
        in_specs=[pl.BlockSpec((tm, fin_p), lambda i: (i, 0)),
                  pl.BlockSpec((fin_p, fout_p), lambda i: (0, 0))],
        out_specs=pl.BlockSpec((tm, fout_p), lambda i: (i, 0)),
        compiler_params=pltpu.CompilerParams(
            dimension_semantics=("parallel",),
            vmem_limit_bytes=_VMEM_LIMIT),
    )(x, w)


def _aggregate(adj, support, b, nclass=None):
    n_p = adj.shape[0]
    fout_p = support.shape[1]
    tm = tk = min(TILE_N, n_p)
    with_ls = nclass is not None

    out_block = pl.BlockSpec((tm, fout_p), lambda i, k: (i, 0))
    if with_ls:
        out_shape = (jax.ShapeDtypeStruct((n_p, fout_p), jnp.float32),
                     jax.ShapeDtypeStruct((n_p, fout_p), jnp.float32))
        out_specs = (out_block, out_block)
    else:
        out_shape = jax.ShapeDtypeStruct((n_p, fout_p), jnp.float32)
        out_specs = out_block

    return pl.pallas_call(
        functools.partial(_aggregate_kernel, nclass, with_ls),
        out_shape=out_shape,
        grid=(n_p // tm, n_p // tk),
        in_specs=[pl.BlockSpec((tm, tk), lambda i, k: (i, k)),
                  pl.BlockSpec((tk, fout_p), lambda i, k: (k, 0)),
                  pl.BlockSpec((1, fout_p), lambda i, k: (0, 0))],
        out_specs=out_specs,
        scratch_shapes=[pltpu.VMEM((tm, fout_p), jnp.float32)],
        compiler_params=pltpu.CompilerParams(
            dimension_semantics=("parallel", "arbitrary"),
            vmem_limit_bytes=_VMEM_LIMIT),
    )(adj, support, b)


def _pad_params(params, fin_p, h_p, c_p):
    return dict(
        w1=_pad2(params["w1"], fin_p, h_p), b1=_pad2(params["b1"], 1, h_p),
        w2=_pad2(params["w2"], h_p, h_p),   b2=_pad2(params["b2"], 1, h_p),
        w3=_pad2(params["w3"], h_p, c_p),   b3=_pad2(params["b3"], 1, c_p),
    )


def _fused_vmem_bytes(n_p, fin_p, h_p, c_p):
    elems = (n_p * fin_p + n_p * n_p
             + fin_p * h_p + h_p + h_p * h_p + h_p + h_p * c_p + c_p
             + 2 * n_p * h_p + 2 * n_p * c_p)
    return 2 * 4 * elems   # f32 + working-set fudge


def gcn_pia2_forward(params, x, adj, *, force_tiled=False):
    """Eval-mode forward of GCN_pia2_unlearn.

    Returns (log_softmax(x3, dim=1), embed1, embed2, embed3).
    """
    # TODO(synk): dropout is the identity here (eval mode / training=False);
    # training-mode dropout is not implemented.
    n, nfeat = x.shape
    nhid = params["w1"].shape[1]
    nclass = params["w3"].shape[1]
    fin_p = _round_up(nfeat, LANE)
    h_p = _round_up(nhid, LANE)
    c_p = _round_up(nclass, LANE)

    pp = _pad_params(params, fin_p, h_p, c_p)

    n_small = _round_up(n, LANE)
    use_fused = (not force_tiled) and (
        _fused_vmem_bytes(n_small, fin_p, h_p, c_p) <= _FUSED_VMEM_BUDGET)

    if use_fused:
        n_p = n_small
        xp = _pad2(x, n_p, fin_p)
        adjp = _pad2(adj, n_p, n_p).astype(_DOT_DTYPE)
        e1, e2, e3, logp = _forward_fused(xp, adjp, pp, nclass)
    else:
        n_p = _round_up(n, TILE_N)
        xp = _pad2(x, n_p, fin_p)
        # Cast adj to bf16 once: it is the dominant HBM traffic and is read
        # by all three aggregation kernels.
        adjp = _pad2(adj, n_p, n_p).astype(_DOT_DTYPE)

        s1 = _support(xp, pp["w1"], apply_relu=False)
        e1 = _aggregate(adjp, s1, pp["b1"])
        s2 = _support(e1, pp["w2"], apply_relu=True)
        e2 = _aggregate(adjp, s2, pp["b2"])
        s3 = _support(e2, pp["w3"], apply_relu=True)
        e3, logp = _aggregate(adjp, s3, pp["b3"], nclass=nclass)

    return (logp[:n, :nclass], e1[:n, :nhid], e2[:n, :nhid], e3[:n, :nclass])


# ---------------------- reference + deterministic params --------------------

def gcn_reference(params, x, adj, dot_dtype=_DOT_DTYPE):
    """Pure-JAX reference with the same bf16-operand / f32-accumulate matmuls."""
    def mm(a, b):
        return jnp.dot(a.astype(dot_dtype), b.astype(dot_dtype),
                       preferred_element_type=jnp.float32)

    def gc(h, w, b):
        return mm(adj, mm(h, w)) + b

    h1 = gc(x, params["w1"], params["b1"])
    h2 = gc(jax.nn.relu(h1), params["w2"], params["b2"])
    h3 = gc(jax.nn.relu(h2), params["w3"], params["b3"])
    return jax.nn.log_softmax(h3, axis=1), h1, h2, h3


def init_params(key, nfeat, nhid, nclass):
    """GraphConvolution reset_parameters: U(-stdv, stdv), stdv = 1/sqrt(fan_out)."""
    def layer(k, fin, fout):
        kw, kb = jax.random.split(k)
        stdv = 1.0 / jnp.sqrt(jnp.float32(fout))
        w = jax.random.uniform(kw, (fin, fout), jnp.float32, -stdv, stdv)
        b = jax.random.uniform(kb, (1, fout), jnp.float32, -stdv, stdv)
        return w, b

    k1, k2, k3 = jax.random.split(key, 3)
    w1, b1 = layer(k1, nfeat, nhid)
    w2, b2 = layer(k2, nhid, nhid)
    w3, b3 = layer(k3, nhid, nclass)
    return dict(w1=w1, b1=b1, w2=w2, b2=b2, w3=w3, b3=b3)


# ----------------------------------- main -----------------------------------

if __name__ == "__main__":
    key = jax.random.PRNGKey(0)
    k_small, k_large = jax.random.split(key)

    cases = [
        # (key, N, NFEAT, NHID, NCLASS, force_tiled)
        (k_small, 16, 32, 32, 8, False),    # fused single-kernel path
        (k_large, 384, 100, 64, 10, True),  # tiled (grid + accumulator) path
    ]

    for case_key, n, nfeat, nhid, nclass, force_tiled in cases:
        kx, kadj, kp = jax.random.split(case_key, 3)

        x = jax.random.normal(kx, (n, nfeat), jnp.float32)

        # Symmetric, row-normalized adjacency with self-loops (typical GCN input).
        a = (jax.random.uniform(kadj, (n, n)) > 0.7).astype(jnp.float32)
        a = jnp.maximum(a, a.T) + jnp.eye(n, dtype=jnp.float32)
        adj = a / jnp.sum(a, axis=1, keepdims=True)

        params = init_params(kp, nfeat, nhid, nclass)

        fwd = jax.jit(functools.partial(gcn_pia2_forward, params,
                                        force_tiled=force_tiled))
        logp, e1, e2, e3 = fwd(x, adj)
        jax.block_until_ready((logp, e1, e2, e3))

        # Shape checks.
        assert logp.shape == (n, nclass) and e3.shape == (n, nclass)
        assert e1.shape == (n, nhid) and e2.shape == (n, nhid)

        # Numerical check against the pure-JAX reference (same bf16 matmuls).
        ref_logp, ref_e1, ref_e2, ref_e3 = gcn_reference(params, x, adj)
        for name, got, want in (("logp", logp, ref_logp), ("e1", e1, ref_e1),
                                ("e2", e2, ref_e2), ("e3", e3, ref_e3)):
            assert jnp.allclose(got, want, atol=5e-3, rtol=5e-3), (
                f"mismatch in {name} (N={n})")

        # log_softmax rows must normalize to 1 in prob space.
        assert jnp.allclose(jnp.sum(jnp.exp(logp), axis=1), 1.0, atol=1e-4)

    print("KERNEL_OK")
</pallas_src>

<mosaic_0001>
module attributes {stable_mosaic.version = 11 : i64} {
  func.func @_gcn_fused_kernel(%arg0: memref<128x128xf32, #tpu.memory_space<vmem>>, %arg1: memref<128x128xbf16, #tpu.memory_space<vmem>>, %arg2: memref<128x128xf32, #tpu.memory_space<vmem>>, %arg3: memref<1x128xf32, #tpu.memory_space<vmem>>, %arg4: memref<128x128xf32, #tpu.memory_space<vmem>>, %arg5: memref<1x128xf32, #tpu.memory_space<vmem>>, %arg6: memref<128x128xf32, #tpu.memory_space<vmem>>, %arg7: memref<1x128xf32, #tpu.memory_space<vmem>>, %arg8: memref<128x128xf32, #tpu.memory_space<vmem>>, %arg9: memref<128x128xf32, #tpu.memory_space<vmem>>, %arg10: memref<128x128xf32, #tpu.memory_space<vmem>>, %arg11: memref<128x128xf32, #tpu.memory_space<vmem>>) attributes {dimension_semantics = [], scalar_prefetch = 0 : i64, scratch_operands = 0 : i64, tpu.core_type = #tpu.core_type<tc>} {
    %c0 = arith.constant 0 : index
    %c0_0 = arith.constant 0 : index
    %0 = vector.load %arg1[%c0, %c0_0] : memref<128x128xbf16, #tpu.memory_space<vmem>>, vector<128x128xbf16>
    %c0_1 = arith.constant 0 : index
    %c0_2 = arith.constant 0 : index
    %1 = vector.load %arg0[%c0_1, %c0_2] : memref<128x128xf32, #tpu.memory_space<vmem>>, vector<128x128xf32>
    %2 = arith.truncf %1 : vector<128x128xf32> to vector<128x128xbf16>
    %c0_3 = arith.constant 0 : index
    %c0_4 = arith.constant 0 : index
    %3 = vector.load %arg2[%c0_3, %c0_4] : memref<128x128xf32, #tpu.memory_space<vmem>>, vector<128x128xf32>
    %4 = arith.truncf %3 : vector<128x128xf32> to vector<128x128xbf16>
    %cst = arith.constant dense<0.000000e+00> : vector<128x128xf32>
    %5 = tpu.matmul %2, %4, %cst {dimension_numbers = #tpu.dot_dimension_numbers<[1], [0], [0], [1], [0, 0, 1, 1], [], []>} : vector<128x128xbf16>, vector<128x128xbf16>, vector<128x128xf32> -> vector<128x128xf32>
    %6 = arith.truncf %5 : vector<128x128xf32> to vector<128x128xbf16>
    %cst_5 = arith.constant dense<0.000000e+00> : vector<128x128xf32>
    %7 = tpu.matmul %0, %6, %cst_5 {dimension_numbers = #tpu.dot_dimension_numbers<[1], [0], [0], [1], [0, 0, 1, 1], [], []>} : vector<128x128xbf16>, vector<128x128xbf16>, vector<128x128xf32> -> vector<128x128xf32>
    %c0_6 = arith.constant 0 : index
    %c0_7 = arith.constant 0 : index
    %8 = vector.load %arg3[%c0_6, %c0_7] : memref<1x128xf32, #tpu.memory_space<vmem>>, vector<1x128xf32>
    %9 = vector.broadcast %8 : vector<1x128xf32> to vector<128x128xf32>
    %10 = arith.addf %7, %9 : vector<128x128xf32>
    %c0_8 = arith.constant 0 : index
    %c0_9 = arith.constant 0 : index
    %11 = vector.load %arg8[%c0_8, %c0_9] : memref<128x128xf32, #tpu.memory_space<vmem>>, vector<128x128xf32>
    tpu.vector_store %arg8[%c0_8, %c0_9], %10 {strides = array<i32>} : memref<128x128xf32, #tpu.memory_space<vmem>>, vector<128x128xf32>,
    %cst_10 = arith.constant 0.000000e+00 : f32
    %12 = vector.broadcast %cst_10 : f32 to vector<128x128xf32>
    %13 = arith.maximumf %10, %12 : vector<128x128xf32>
    %14 = arith.truncf %13 : vector<128x128xf32> to vector<128x128xbf16>
    %c0_11 = arith.constant 0 : index
    %c0_12 = arith.constant 0 : index
    %15 = vector.load %arg4[%c0_11, %c0_12] : memref<128x128xf32, #tpu.memory_space<vmem>>, vector<128x128xf32>
    %16 = arith.truncf %15 : vector<128x128xf32> to vector<128x128xbf16>
    %cst_13 = arith.constant dense<0.000000e+00> : vector<128x128xf32>
    %17 = tpu.matmul %14, %16, %cst_13 {dimension_numbers = #tpu.dot_dimension_numbers<[1], [0], [0], [1], [0, 0, 1, 1], [], []>} : vector<128x128xbf16>, vector<128x128xbf16>, vector<128x128xf32> -> vector<128x128xf32>
    %18 = arith.truncf %17 : vector<128x128xf32> to vector<128x128xbf16>
    %cst_14 = arith.constant dense<0.000000e+00> : vector<128x128xf32>
    %19 = tpu.matmul %0, %18, %cst_14 {dimension_numbers = #tpu.dot_dimension_numbers<[1], [0], [0], [1], [0, 0, 1, 1], [], []>} : vector<128x128xbf16>, vector<128x128xbf16>, vector<128x128xf32> -> vector<128x128xf32>
    %c0_15 = arith.constant 0 : index
    %c0_16 = arith.constant 0 : index
    %20 = vector.load %arg5[%c0_15, %c0_16] : memref<1x128xf32, #tpu.memory_space<vmem>>, vector<1x128xf32>
    %21 = vector.broadcast %20 : vector<1x128xf32> to vector<128x128xf32>
    %22 = arith.addf %19, %21 : vector<128x128xf32>
    %c0_17 = arith.constant 0 : index
    %c0_18 = arith.constant 0 : index
    %23 = vector.load %arg9[%c0_17, %c0_18] : memref<128x128xf32, #tpu.memory_space<vmem>>, vector<128x128xf32>
    tpu.vector_store %arg9[%c0_17, %c0_18], %22 {strides = array<i32>} : memref<128x128xf32, #tpu.memory_space<vmem>>, vector<128x128xf32>,
    %cst_19 = arith.constant 0.000000e+00 : f32
    %24 = vector.broadcast %cst_19 : f32 to vector<128x128xf32>
    %25 = arith.maximumf %22, %24 : vector<128x128xf32>
    %26 = arith.truncf %25 : vector<128x128xf32> to vector<128x128xbf16>
    %c0_20 = arith.constant 0 : index
    %c0_21 = arith.constant 0 : index
    %27 = vector.load %arg6[%c0_20, %c0_21] : memref<128x128xf32, #tpu.memory_space<vmem>>, vector<128x128xf32>
    %28 = arith.truncf %27 : vector<128x128xf32> to vector<128x128xbf16>
    %cst_22 = arith.constant dense<0.000000e+00> : vector<128x128xf32>
    %29 = tpu.matmul %26, %28, %cst_22 {dimension_numbers = #tpu.dot_dimension_numbers<[1], [0], [0], [1], [0, 0, 1, 1], [], []>} : vector<128x128xbf16>, vector<128x128xbf16>, vector<128x128xf32> -> vector<128x128xf32>
    %30 = arith.truncf %29 : vector<128x128xf32> to vector<128x128xbf16>
    %cst_23 = arith.constant dense<0.000000e+00> : vector<128x128xf32>
    %31 = tpu.matmul %0, %30, %cst_23 {dimension_numbers = #tpu.dot_dimension_numbers<[1], [0], [0], [1], [0, 0, 1, 1], [], []>} : vector<128x128xbf16>, vector<128x128xbf16>, vector<128x128xf32> -> vector<128x128xf32>
    %c0_24 = arith.constant 0 : index
    %c0_25 = arith.constant 0 : index
    %32 = vector.load %arg7[%c0_24, %c0_25] : memref<1x128xf32, #tpu.memory_space<vmem>>, vector<1x128xf32>
    %33 = vector.broadcast %32 : vector<1x128xf32> to vector<128x128xf32>
    %34 = arith.addf %31, %33 : vector<128x128xf32>
    %c0_26 = arith.constant 0 : index
    %c0_27 = arith.constant 0 : index
    %35 = vector.load %arg10[%c0_26, %c0_27] : memref<128x128xf32, #tpu.memory_space<vmem>>, vector<128x128xf32>
    tpu.vector_store %arg10[%c0_26, %c0_27], %34 {strides = array<i32>} : memref<128x128xf32, #tpu.memory_space<vmem>>, vector<128x128xf32>,
    %36 = tpu.iota {dimensions = array<i32: 1>} : vector<128x128xi32>
    %c8_i32 = arith.constant 8 : i32
    %37 = vector.broadcast %c8_i32 : i32 to vector<128x128xi32>
    %38 = arith.cmpi slt, %36, %37 : vector<128x128xi32>
    %cst_28 = arith.constant -1.000000e+30 : f32
    %39 = vector.broadcast %cst_28 : f32 to vector<128x128xf32>
    %40 = arith.select %38, %34, %39 : vector<128x128xi1>, vector<128x128xf32>
    %cst_29 = arith.constant dense<0xFF800000> : vector<128xf32>
    %41 = vector.multi_reduction <maximumf>, %40, %cst_29 [1] : vector<128x128xf32> to vector<128xf32>
    %42 = vector.shape_cast %41 : vector<128xf32> to vector<128x1xf32>
    %43 = vector.broadcast %42 : vector<128x1xf32> to vector<128x128xf32>
    %44 = arith.subf %40, %43 : vector<128x128xf32>
    %45 = math.exp %44 : vector<128x128xf32>
    %cst_30 = arith.constant dense<0.000000e+00> : vector<128xf32>
    %46 = vector.multi_reduction <add>, %45, %cst_30 [1] : vector<128x128xf32> to vector<128xf32>
    %47 = vector.shape_cast %46 : vector<128xf32> to vector<128x1xf32>
    %48 = math.log %47 : vector<128x1xf32>
    %49 = vector.broadcast %48 : vector<128x1xf32> to vector<128x128xf32>
    %50 = arith.subf %44, %49 : vector<128x128xf32>
    %c0_31 = arith.constant 0 : index
    %c0_32 = arith.constant 0 : index
    %51 = vector.load %arg11[%c0_31, %c0_32] : memref<128x128xf32, #tpu.memory_space<vmem>>, vector<128x128xf32>
    tpu.vector_store %arg11[%c0_31, %c0_32], %50 {strides = array<i32>} : memref<128x128xf32, #tpu.memory_space<vmem>>, vector<128x128xf32>,
    return
  }
}

</mosaic_0001>

<llo_original>
// kernel: gcn_pia2_forward.1
$region0: #{gcn_pia2_forward.1}
  #allocation0 [shape = 'u32[]', space=smem, size = 0x4, offset = 0x4, fixed_abs, tag = 'smem constant byte address 0x4 - core index']
  #allocation1 [shape = 'u32[144,128]{1,0:T(1,128)}', space=vmem, size = 0x12000, scoped, tag = 'internal scratch']
  %s0 = inlined_call_operand.vmem [shape: f32[128,128], index: 0, kind: input, shape index: {}]
  %s1 = inlined_call_operand.vmem [shape: bf16[128,128], index: 1, kind: input, shape index: {}]
  %s2 = inlined_call_operand.hbm [shape: f32[128,128], index: 2, kind: input, shape index: {}]
  %s3 = inlined_call_operand.hbm [shape: f32[1,128], index: 3, kind: input, shape index: {}]
  %s4 = inlined_call_operand.vmem [shape: f32[128,128], index: 4, kind: input, shape index: {}]
  %s5 = inlined_call_operand.vmem [shape: f32[1,128], index: 5, kind: input, shape index: {}]
  %s6 = inlined_call_operand.vmem [shape: f32[128,128], index: 6, kind: input, shape index: {}]
  %s7 = inlined_call_operand.vmem [shape: f32[1,128], index: 7, kind: input, shape index: {}]
  %s8 = inlined_call_operand.vmem [shape: f32[128,128], index: 8, kind: output, shape index: {0}]
  %s9 = inlined_call_operand.vmem [shape: f32[128,128], index: 9, kind: output, shape index: {1}]
  %s10 = inlined_call_operand.vmem [shape: f32[128,128], index: 10, kind: output, shape index: {2}]
  %s11 = inlined_call_operand.vmem [shape: f32[128,128], index: 11, kind: output, shape index: {3}]
  %12 = xla_tuple %s8, %s9, %s10, %s11
  %s13 = sld [smem:[#allocation0]]
  $region74: #{gcn_pia2_forward.1} parent=0
    _
  %s15 = ssub.s32 1, %s13
  %s16 = scalar_select 0, %s15, %s13
  $region1: #{gcn_pia2_forward.1} parent=0
    #allocation2 [shape = 'u8[65536]{0}', space=vmem, size = 0x10000, scoped, tag = 'input window, operand 2, single buffered']
    #allocation3 [shape = 's32[1]{0}', space=sflag, size = 0x4, scoped, tag = 'scoped memory for gcn_pia2_forward.1']
    #allocation4 [shape = 'u8[512]{0}', space=vmem, size = 0x400, scoped, tag = 'input window, operand 3, single buffered']
    #allocation5 [shape = 's32[1]{0}', space=sflag, size = 0x4, scoped, tag = 'scoped memory for gcn_pia2_forward.1']
    %17 = vsyncpa [#allocation3], 0
    %18 = vsyncpa [#allocation5], 0
    // Predicated region
    $region2: #{gcn_pia2_forward.1} parent=1 // pred_check
      _
    $region3: #{gcn_pia2_forward.1} parent=1 // pred_check_branch
      %20 = sbr.rel (0) target = $region5
    $region4: #{gcn_pia2_forward.1} parent=1 // pred_region
      _
    $region5: #{gcn_pia2_forward.1} parent=1 // pred_fallthru
      _
    // Predicated region
    $region6: #{gcn_pia2_forward.1} parent=1 // pred_check
      _
    $region7: #{gcn_pia2_forward.1} parent=1 // pred_check_branch
      %22 = sbr.rel (0) target = $region9
    $region8: #{gcn_pia2_forward.1} parent=1 // pred_region
      _
    $region9: #{gcn_pia2_forward.1} parent=1 // pred_fallthru
      _
    // Predicated region
    $region10: #{gcn_pia2_forward.1} parent=1 // pred_check
      _
    $region11: #{gcn_pia2_forward.1} parent=1 // pred_check_branch
      %24 = sbr.rel (0) target = $region13
    $region12: #{gcn_pia2_forward.1} parent=1 // pred_region
      %s26 = ssub.s32 2048, 2048
      %27 = vsyncadd [#allocation3], %s26
      %s28 = sshll.u32 [#allocation2], 4
      %s29 = int_to_ptr.vmem [resolvable:$true] %s28
      %34 = dma.hbm_to_vmem [thread:$0]  %s2, 2048, %s29, [#allocation3], 128, 128, 8
    $region13: #{gcn_pia2_forward.1} parent=1 // pred_fallthru
      _
    // Predicated region
    $region14: #{gcn_pia2_forward.1} parent=1 // pred_check
      _
    $region15: #{gcn_pia2_forward.1} parent=1 // pred_check_branch
      %36 = sbr.rel (0) target = $region17
    $region16: #{gcn_pia2_forward.1} parent=1 // pred_region
      %s38 = ssub.s32 16, 16
      %39 = vsyncadd [#allocation5], %s38
      %s41 = sshll.u32 [#allocation4], 4
      %s42 = int_to_ptr.vmem [resolvable:$true] %s41
      %44 = dma.hbm_to_vmem [thread:$0]  %s3, 16, %s42, [#allocation5]
    $region17: #{gcn_pia2_forward.1} parent=1 // pred_fallthru
      _
    // Predicated region
    $region18: #{gcn_pia2_forward.1} parent=1 // pred_check
      _
    $region19: #{gcn_pia2_forward.1} parent=1 // pred_check_branch
      %46 = sbr.rel (0) target = $region21
    $region20: #{gcn_pia2_forward.1} parent=1 // pred_region
      _
    $region21: #{gcn_pia2_forward.1} parent=1 // pred_fallthru
      _
    // Predicated region
    $region22: #{gcn_pia2_forward.1} parent=1 // pred_check
      _
    $region23: #{gcn_pia2_forward.1} parent=1 // pred_check_branch
      %48 = sbr.rel (0) target = $region25
    $region24: #{gcn_pia2_forward.1} parent=1 // pred_region
      _
    $region25: #{gcn_pia2_forward.1} parent=1 // pred_fallthru
      _
    // Predicated region
    $region26: #{gcn_pia2_forward.1} parent=1 // pred_check
      _
    $region27: #{gcn_pia2_forward.1} parent=1 // pred_check_branch
      %50 = sbr.rel (0) target = $region29
    $region28: #{gcn_pia2_forward.1} parent=1 // pred_region
      _
    $region29: #{gcn_pia2_forward.1} parent=1 // pred_fallthru
      _
    // Predicated region
    $region30: #{gcn_pia2_forward.1} parent=1 // pred_check
      _
    $region31: #{gcn_pia2_forward.1} parent=1 // pred_check_branch
      %52 = sbr.rel (0) target = $region33
    $region32: #{gcn_pia2_forward.1} parent=1 // pred_region
      _
    $region33: #{gcn_pia2_forward.1} parent=1 // pred_fallthru
      _
    // Predicated region
    $region34: #{gcn_pia2_forward.1} parent=1 // pred_check
      _
    $region35: #{gcn_pia2_forward.1} parent=1 // pred_check_branch
      %54 = sbr.rel (0) target = $region37
    $region36: #{gcn_pia2_forward.1} parent=1 // pred_region
      %55 = dma.done [#allocation3], 2048
    $region37: #{gcn_pia2_forward.1} parent=1 // pred_fallthru
      _
    // Predicated region
    $region38: #{gcn_pia2_forward.1} parent=1 // pred_check
      _
    $region39: #{gcn_pia2_forward.1} parent=1 // pred_check_branch
      %57 = sbr.rel (0) target = $region41
    $region40: #{gcn_pia2_forward.1} parent=1 // pred_region
      %58 = dma.done [#allocation5], 16
    $region41: #{gcn_pia2_forward.1} parent=1 // pred_fallthru
      _
    %v60 = vld [vmem:[%s1] sm:$0xf]
    %v61 = vld [vmem:[%s1 + $0x4] sm:$0xf]
    %v62 = vld [vmem:[%s1 + $0x8] sm:$0xf]
    %v63 = vld [vmem:[%s1 + $0xc] sm:$0xf]
    %v64 = vld [vmem:[%s1 + $0x10] sm:$0xf]
    %v65 = vld [vmem:[%s1 + $0x14] sm:$0xf]
    %v66 = vld [vmem:[%s1 + $0x18] sm:$0xf]
    %v67 = vld [vmem:[%s1 + $0x1c] sm:$0xf]
    %v68 = vld [vmem:[%s1 + $0x20] sm:$0xf]
    %v69 = vld [vmem:[%s1 + $0x24] sm:$0xf]
    %v70 = vld [vmem:[%s1 + $0x28] sm:$0xf]
    %v71 = vld [vmem:[%s1 + $0x2c] sm:$0xf]
    %v72 = vld [vmem:[%s1 + $0x30] sm:$0xf]
    %v73 = vld [vmem:[%s1 + $0x34] sm:$0xf]
    %v74 = vld [vmem:[%s1 + $0x38] sm:$0xf]
    %v75 = vld [vmem:[%s1 + $0x3c] sm:$0xf]
    %v76 = vld [vmem:[%s0] sm:$0xff]
    %v77 = vld [vmem:[%s0 + $0x8] sm:$0xff]
    %v78 = vld [vmem:[%s0 + $0x10] sm:$0xff]
    %v79 = vld [vmem:[%s0 + $0x18] sm:$0xff]
    %v80 = vld [vmem:[%s0 + $0x20] sm:$0xff]
    %v81 = vld [vmem:[%s0 + $0x28] sm:$0xff]
    %v82 = vld [vmem:[%s0 + $0x30] sm:$0xff]
    %v83 = vld [vmem:[%s0 + $0x38] sm:$0xff]
    %v84 = vld [vmem:[%s0 + $0x40] sm:$0xff]
    %v85 = vld [vmem:[%s0 + $0x48] sm:$0xff]
    %v86 = vld [vmem:[%s0 + $0x50] sm:$0xff]
    %v87 = vld [vmem:[%s0 + $0x58] sm:$0xff]
    %v88 = vld [vmem:[%s0 + $0x60] sm:$0xff]
    %v89 = vld [vmem:[%s0 + $0x68] sm:$0xff]
    %v90 = vld [vmem:[%s0 + $0x70] sm:$0xff]
    %v91 = vld [vmem:[%s0 + $0x78] sm:$0xff]
    %v92 = vpack.c.bf16 %v77, %v76
    %v93 = vpack.c.bf16 %v79, %v78
    %v94 = vpack.c.bf16 %v81, %v80
    %v95 = vpack.c.bf16 %v83, %v82
    %v96 = vpack.c.bf16 %v85, %v84
    %v97 = vpack.c.bf16 %v87, %v86
    %v98 = vpack.c.bf16 %v89, %v88
    %v99 = vpack.c.bf16 %v91, %v90
    %v100 = vld [vmem:[#allocation2] sm:$0xff]
    %v101 = vld [vmem:[#allocation2 + $0x8] sm:$0xff]
    %v102 = vld [vmem:[#allocation2 + $0x10] sm:$0xff]
    %v103 = vld [vmem:[#allocation2 + $0x18] sm:$0xff]
    %v104 = vld [vmem:[#allocation2 + $0x20] sm:$0xff]
    %v105 = vld [vmem:[#allocation2 + $0x28] sm:$0xff]
    %v106 = vld [vmem:[#allocation2 + $0x30] sm:$0xff]
    %v107 = vld [vmem:[#allocation2 + $0x38] sm:$0xff]
    %v108 = vld [vmem:[#allocation2 + $0x40] sm:$0xff]
    %v109 = vld [vmem:[#allocation2 + $0x48] sm:$0xff]
    %v110 = vld [vmem:[#allocation2 + $0x50] sm:$0xff]
    %v111 = vld [vmem:[#allocation2 + $0x58] sm:$0xff]
    %v112 = vld [vmem:[#allocation2 + $0x60] sm:$0xff]
    %v113 = vld [vmem:[#allocation2 + $0x68] sm:$0xff]
    %v114 = vld [vmem:[#allocation2 + $0x70] sm:$0xff]
    %v115 = vld [vmem:[#allocation2 + $0x78] sm:$0xff]
    %v116 = vpack.c.bf16 %v101, %v100
    %v117 = vpack.c.bf16 %v103, %v102
    %v118 = vpack.c.bf16 %v105, %v104
    %v119 = vpack.c.bf16 %v107, %v106
    %v120 = vpack.c.bf16 %v109, %v108
    %v121 = vpack.c.bf16 %v111, %v110
    %v122 = vpack.c.bf16 %v113, %v112
    %v123 = vpack.c.bf16 %v115, %v114
    %124 = vmatprep.subr.bf16.mxu0 0
    %125 = vmatpush1.bf16.msra.mxu0 %v116
    %126 = vmatprep.subr.bf16.mxu0 0
    %127 = vmatpush1.bf16.msra.mxu0 %v117
    %128 = vmatprep.subr.bf16.mxu0 0
    %129 = vmatpush1.bf16.msra.mxu0 %v118
    %130 = vmatprep.subr.bf16.mxu0 0
    %131 = vmatpush1.bf16.msra.mxu0 %v119
    %132 = vmatprep.subr.bf16.mxu0 0
    %133 = vmatpush1.bf16.msra.mxu0 %v120
    %134 = vmatprep.subr.bf16.mxu0 0
    %135 = vmatpush1.bf16.msra.mxu0 %v121
    %136 = vmatprep.subr.bf16.mxu0 0
    %137 = vmatpush1.bf16.msra.mxu0 %v122
    %138 = vmatprep.subr.bf16.mxu0 0
    %139 = vmatpush1.bf16.msra.mxu0 %v123
    %140 = vmatprep.subr.bf16.mxu0 0
    %141 = vmatpush1.bf16.msra.mxu0 0
    %142 = vmatprep.subr.bf16.mxu0 0
    %143 = vmatpush1.bf16.msra.mxu0 0
    %144 = vmatprep.subr.bf16.mxu0 0
    %145 = vmatpush1.bf16.msra.mxu0 0
    %146 = vmatprep.subr.bf16.mxu0 0
    %147 = vmatpush1.bf16.msra.mxu0 0
    %148 = vmatprep.subr.bf16.mxu0 0
    %149 = vmatpush1.bf16.msra.mxu0 0
    %150 = vmatprep.subr.bf16.mxu0 0
    %151 = vmatpush1.bf16.msra.mxu0 0
    %152 = vmatprep.subr.bf16.mxu0 0
    %153 = vmatpush1.bf16.msra.mxu0 0
    %154 = vmatprep.subr.bf16.mxu0 0
    %155 = vmatpush1.bf16.msra.mxu0 0
    %156 = vmatprep.mubr.bf16.mxu0 0
    %157 = vmatmul.mubr.bf16.gmra.mrb[0].mxu0 %v92
    %v158 = vpop.f32.mrb[0].mxu0
    %v159 = vadd.f32 0.0, %v158
    %v160 = vpop.f32.mrb[0].mxu0
    %v161 = vpop.f32.mrb[0].mxu0
    %v162 = vadd.f32 0.0, %v161
    %v163 = vpop.f32.mrb[0].mxu0
    %164 = vmatprep.mubr.bf16.mxu0 0
    %165 = vmatmul.mubr.bf16.gmra.mrb[0].mxu0 %v93
    %v166 = vpop.f32.mrb[0].mxu0
    %v167 = vadd.f32 0.0, %v166
    %v168 = vpop.f32.mrb[0].mxu0
    %v169 = vpop.f32.mrb[0].mxu0
    %v170 = vadd.f32 0.0, %v169
    %v171 = vpop.f32.mrb[0].mxu0
    %172 = vmatprep.mubr.bf16.mxu0 0
    %173 = vmatmul.mubr.bf16.gmra.mrb[0].mxu0 %v94
    %v174 = vpop.f32.mrb[0].mxu0
    %v175 = vadd.f32 0.0, %v174
    %v176 = vpop.f32.mrb[0].mxu0
    %v177 = vpop.f32.mrb[0].mxu0
    %v178 = vadd.f32 0.0, %v177
    %v179 = vpop.f32.mrb[0].mxu0
    %180 = vmatprep.mubr.bf16.mxu0 0
    %181 = vmatmul.mubr.bf16.gmra.mrb[0].mxu0 %v95
    %v182 = vpop.f32.mrb[0].mxu0
    %v183 = vadd.f32 0.0, %v182
    %v184 = vpop.f32.mrb[0].mxu0
    %v185 = vpop.f32.mrb[0].mxu0
    %v186 = vadd.f32 0.0, %v185
    %v187 = vpop.f32.mrb[0].mxu0
    %188 = vmatprep.mubr.bf16.mxu0 0
    %189 = vmatmul.mubr.bf16.gmra.mrb[0].mxu0 %v96
    %v190 = vpop.f32.mrb[0].mxu0
    %v191 = vadd.f32 0.0, %v190
    %v192 = vpop.f32.mrb[0].mxu0
    %v193 = vpop.f32.mrb[0].mxu0
    %v194 = vadd.f32 0.0, %v193
    %v195 = vpop.f32.mrb[0].mxu0
    %196 = vmatprep.mubr.bf16.mxu0 0
    %197 = vmatmul.mubr.bf16.gmra.mrb[0].mxu0 %v97
    %v198 = vpop.f32.mrb[0].mxu0
    %v199 = vadd.f32 0.0, %v198
    %v200 = vpop.f32.mrb[0].mxu0
    %v201 = vpop.f32.mrb[0].mxu0
    %v202 = vadd.f32 0.0, %v201
    %v203 = vpop.f32.mrb[0].mxu0
    %204 = vmatprep.mubr.bf16.mxu0 0
    %205 = vmatmul.mubr.bf16.gmra.mrb[0].mxu0 %v98
    %v206 = vpop.f32.mrb[0].mxu0
    %v207 = vadd.f32 0.0, %v206
    %v208 = vpop.f32.mrb[0].mxu0
    %v209 = vpop.f32.mrb[0].mxu0
    %v210 = vadd.f32 0.0, %v209
    %v211 = vpop.f32.mrb[0].mxu0
    %212 = vmatprep.mubr.bf16.mxu0 0
    %213 = vmatmul.mubr.bf16.gmra.mrb[0].mxu0 %v99
    %v214 = vpop.f32.mrb[0].mxu0
    %v215 = vadd.f32 0.0, %v214
    %v216 = vpop.f32.mrb[0].mxu0
    %v217 = vpop.f32.mrb[0].mxu0
    %v218 = vadd.f32 0.0, %v217
    %v219 = vpop.f32.mrb[0].mxu0
    %220 = vdwg.mxu0
    %v221 = vpack.c.bf16 %v162, %v159
    %v222 = vpack.c.bf16 %v170, %v167
    %v223 = vpack.c.bf16 %v178, %v175
    %v224 = vpack.c.bf16 %v186, %v183
    %v225 = vpack.c.bf16 %v194, %v191
    %v226 = vpack.c.bf16 %v202, %v199
    %v227 = vpack.c.bf16 %v210, %v207
    %v228 = vpack.c.bf16 %v218, %v215
    %v229 = vld [vmem:[#allocation4] sm:$0x1]
    %v231 = vlaneseq
    %v232 = vshrl.u32 %v231, 7
    %v233 = vsub.s32 0, %v232
    %v234 = vrot.slane %v229, %v233
    %v252 = vunpack.c.l.b16 %v60
    %v253 = vunpack.c.l.b16 %v61
    %v254 = vunpack.c.l.b16 %v62
    %v255 = vunpack.c.l.b16 %v63
    %v256 = vunpack.c.l.b16 %v64
    %v257 = vunpack.c.l.b16 %v65
    %v258 = vunpack.c.l.b16 %v66
    %v259 = vunpack.c.l.b16 %v67
    %v260 = vunpack.c.l.b16 %v68
    %v261 = vunpack.c.l.b16 %v69
    %v262 = vunpack.c.l.b16 %v70
    %v263 = vunpack.c.l.b16 %v71
    %v264 = vunpack.c.l.b16 %v72
    %v265 = vunpack.c.l.b16 %v73
    %v266 = vunpack.c.l.b16 %v74
    %v267 = vunpack.c.l.b16 %v75
    %v268 = vpack.c.b16 %v253, %v252
    %v269 = vpack.c.b16 %v255, %v254
    %v270 = vpack.c.b16 %v257, %v256
    %v271 = vpack.c.b16 %v259, %v258
    %v272 = vpack.c.b16 %v261, %v260
    %v273 = vpack.c.b16 %v263, %v262
    %v274 = vpack.c.b16 %v265, %v264
    %v275 = vpack.c.b16 %v267, %v266
    %284 = vmatprep.subr.bf16.mxu0 0
    %285 = vmatpush1.bf16.msra.mxu0 %v221
    %286 = vmatprep.subr.bf16.mxu0 0
    %287 = vmatpush1.bf16.msra.mxu0 %v222
    %288 = vmatprep.subr.bf16.mxu0 0
    %289 = vmatpush1.bf16.msra.mxu0 %v223
    %290 = vmatprep.subr.bf16.mxu0 0
    %291 = vmatpush1.bf16.msra.mxu0 %v224
    %292 = vmatprep.subr.bf16.mxu0 0
    %293 = vmatpush1.bf16.msra.mxu0 %v225
    %294 = vmatprep.subr.bf16.mxu0 0
    %295 = vmatpush1.bf16.msra.mxu0 %v226
    %296 = vmatprep.subr.bf16.mxu0 0
    %297 = vmatpush1.bf16.msra.mxu0 %v227
    %298 = vmatprep.subr.bf16.mxu0 0
    %299 = vmatpush1.bf16.msra.mxu0 %v228
    %300 = vmatprep.subr.bf16.mxu0 0
    %301 = vmatpush1.bf16.msra.mxu0 0
    %302 = vmatprep.subr.bf16.mxu0 0
    %303 = vmatpush1.bf16.msra.mxu0 0
    %304 = vmatprep.subr.bf16.mxu0 0
    %305 = vmatpush1.bf16.msra.mxu0 0
    %306 = vmatprep.subr.bf16.mxu0 0
    %307 = vmatpush1.bf16.msra.mxu0 0
    %308 = vmatprep.subr.bf16.mxu0 0
    %309 = vmatpush1.bf16.msra.mxu0 0
    %310 = vmatprep.subr.bf16.mxu0 0
    %311 = vmatpush1.bf16.msra.mxu0 0
    %312 = vmatprep.subr.bf16.mxu0 0
    %313 = vmatpush1.bf16.msra.mxu0 0
    %314 = vmatprep.subr.bf16.mxu0 0
    %315 = vmatpush1.bf16.msra.mxu0 0
    %316 = vmatprep.mubr.bf16.mxu0 0
    %317 = vmatmul.mubr.bf16.gmra.mrb[0].mxu0 %v268
    %v318 = vpop.f32.mrb[0].mxu0
    %v319 = vadd.f32 %v234, %v318
    %v320 = vpop.f32.mrb[0].mxu0
    %v321 = vpop.f32.mrb[0].mxu0
    %v322 = vadd.f32 %v234, %v321
    %v323 = vpop.f32.mrb[0].mxu0
    %324 = vmatprep.mubr.bf16.mxu0 0
    %325 = vmatmul.mubr.bf16.gmra.mrb[0].mxu0 %v269
    %v326 = vpop.f32.mrb[0].mxu0
    %v327 = vadd.f32 %v234, %v326
    %v328 = vpop.f32.mrb[0].mxu0
    %v329 = vpop.f32.mrb[0].mxu0
    %v330 = vadd.f32 %v234, %v329
    %v331 = vpop.f32.mrb[0].mxu0
    %332 = vmatprep.mubr.bf16.mxu0 0
    %333 = vmatmul.mubr.bf16.gmra.mrb[0].mxu0 %v270
    %v334 = vpop.f32.mrb[0].mxu0
    %v335 = vadd.f32 %v234, %v334
    %v336 = vpop.f32.mrb[0].mxu0
    %v337 = vpop.f32.mrb[0].mxu0
    %v338 = vadd.f32 %v234, %v337
    %v339 = vpop.f32.mrb[0].mxu0
    %340 = vmatprep.mubr.bf16.mxu0 0
    %341 = vmatmul.mubr.bf16.gmra.mrb[0].mxu0 %v271
    %v342 = vpop.f32.mrb[0].mxu0
    %v343 = vadd.f32 %v234, %v342
    %v344 = vpop.f32.mrb[0].mxu0
    %v345 = vpop.f32.mrb[0].mxu0
    %v346 = vadd.f32 %v234, %v345
    %v347 = vpop.f32.mrb[0].mxu0
    %348 = vmatprep.mubr.bf16.mxu0 0
    %349 = vmatmul.mubr.bf16.gmra.mrb[0].mxu0 %v272
    %v350 = vpop.f32.mrb[0].mxu0
    %v351 = vadd.f32 %v234, %v350
    %v352 = vpop.f32.mrb[0].mxu0
    %v353 = vpop.f32.mrb[0].mxu0
    %v354 = vadd.f32 %v234, %v353
    %v355 = vpop.f32.mrb[0].mxu0
    %356 = vmatprep.mubr.bf16.mxu0 0
    %357 = vmatmul.mubr.bf16.gmra.mrb[0].mxu0 %v273
    %v358 = vpop.f32.mrb[0].mxu0
    %v359 = vadd.f32 %v234, %v358
    %v360 = vpop.f32.mrb[0].mxu0
    %v361 = vpop.f32.mrb[0].mxu0
    %v362 = vadd.f32 %v234, %v361
    %v363 = vpop.f32.mrb[0].mxu0
    %364 = vmatprep.mubr.bf16.mxu0 0
    %365 = vmatmul.mubr.bf16.gmra.mrb[0].mxu0 %v274
    %v366 = vpop.f32.mrb[0].mxu0
    %v367 = vadd.f32 %v234, %v366
    %v368 = vpop.f32.mrb[0].mxu0
    %v369 = vpop.f32.mrb[0].mxu0
    %v370 = vadd.f32 %v234, %v369
    %v371 = vpop.f32.mrb[0].mxu0
    %372 = vmatprep.mubr.bf16.mxu0 0
    %373 = vmatmul.mubr.bf16.gmra.mrb[0].mxu0 %v275
    %v374 = vpop.f32.mrb[0].mxu0
    %v375 = vadd.f32 %v234, %v374
    %v376 = vpop.f32.mrb[0].mxu0
    %v377 = vpop.f32.mrb[0].mxu0
    %v378 = vadd.f32 %v234, %v377
    %v379 = vpop.f32.mrb[0].mxu0
    %380 = vdwg.mxu0
    %381 = vst [vmem:[%s8] sm:$0xff] %v319
    %382 = vst [vmem:[%s8 + $0x8] sm:$0xff] %v322
    %383 = vst [vmem:[%s8 + $0x10] sm:$0xff] %v327
    %384 = vst [vmem:[%s8 + $0x18] sm:$0xff] %v330
    %385 = vst [vmem:[%s8 + $0x20] sm:$0xff] %v335
    %386 = vst [vmem:[%s8 + $0x28] sm:$0xff] %v338
    %387 = vst [vmem:[%s8 + $0x30] sm:$0xff] %v343
    %388 = vst [vmem:[%s8 + $0x38] sm:$0xff] %v346
    %389 = vst [vmem:[%s8 + $0x40] sm:$0xff] %v351
    %390 = vst [vmem:[%s8 + $0x48] sm:$0xff] %v354
    %391 = vst [vmem:[%s8 + $0x50] sm:$0xff] %v359
    %392 = vst [vmem:[%s8 + $0x58] sm:$0xff] %v362
    %393 = vst [vmem:[%s8 + $0x60] sm:$0xff] %v367
    %394 = vst [vmem:[%s8 + $0x68] sm:$0xff] %v370
    %395 = vst [vmem:[%s8 + $0x70] sm:$0xff] %v375
    %396 = vst [vmem:[%s8 + $0x78] sm:$0xff] %v378
    %v397 = vmax.f32 %v319, 0.0
    %v398 = vmax.f32 %v322, 0.0
    %v399 = vmax.f32 %v327, 0.0
    %v400 = vmax.f32 %v330, 0.0
    %v401 = vmax.f32 %v335, 0.0
    %v402 = vmax.f32 %v338, 0.0
    %v403 = vmax.f32 %v343, 0.0
    %v404 = vmax.f32 %v346, 0.0
    %v405 = vmax.f32 %v351, 0.0
    %v406 = vmax.f32 %v354, 0.0
    %v407 = vmax.f32 %v359, 0.0
    %v408 = vmax.f32 %v362, 0.0
    %v409 = vmax.f32 %v367, 0.0
    %v410 = vmax.f32 %v370, 0.0
    %v411 = vmax.f32 %v375, 0.0
    %v412 = vmax.f32 %v378, 0.0
    %v413 = vpack.c.bf16 %v398, %v397
    %v414 = vpack.c.bf16 %v400, %v399
    %v415 = vpack.c.bf16 %v402, %v401
    %v416 = vpack.c.bf16 %v404, %v403
    %v417 = vpack.c.bf16 %v406, %v405
    %v418 = vpack.c.bf16 %v408, %v407
    %v419 = vpack.c.bf16 %v410, %v409
    %v420 = vpack.c.bf16 %v412, %v411
    %v421 = vld [vmem:[%s4] sm:$0xff]
    %v422 = vld [vmem:[%s4 + $0x8] sm:$0xff]
    %v423 = vld [vmem:[%s4 + $0x10] sm:$0xff]
    %v424 = vld [vmem:[%s4 + $0x18] sm:$0xff]
    %v425 = vld [vmem:[%s4 + $0x20] sm:$0xff]
    %v426 = vld [vmem:[%s4 + $0x28] sm:$0xff]
    %v427 = vld [vmem:[%s4 + $0x30] sm:$0xff]
    %v428 = vld [vmem:[%s4 + $0x38] sm:$0xff]
    %v429 = vld [vmem:[%s4 + $0x40] sm:$0xff]
    %v430 = vld [vmem:[%s4 + $0x48] sm:$0xff]
    %v431 = vld [vmem:[%s4 + $0x50] sm:$0xff]
    %v432 = vld [vmem:[%s4 + $0x58] sm:$0xff]
    %v433 = vld [vmem:[%s4 + $0x60] sm:$0xff]
    %v434 = vld [vmem:[%s4 + $0x68] sm:$0xff]
    %v435 = vld [vmem:[%s4 + $0x70] sm:$0xff]
    %v436 = vld [vmem:[%s4 + $0x78] sm:$0xff]
    %v437 = vpack.c.bf16 %v422, %v421
    %v438 = vpack.c.bf16 %v424, %v423
    %v439 = vpack.c.bf16 %v426, %v425
    %v440 = vpack.c.bf16 %v428, %v427
    %v441 = vpack.c.bf16 %v430, %v429
    %v442 = vpack.c.bf16 %v432, %v431
    %v443 = vpack.c.bf16 %v434, %v433
    %v444 = vpack.c.bf16 %v436, %v435
    %445 = vmatprep.subr.bf16.mxu0 0
    %446 = vmatpush1.bf16.msra.mxu0 %v437
    %447 = vmatprep.subr.bf16.mxu0 0
    %448 = vmatpush1.bf16.msra.mxu0 %v438
    %449 = vmatprep.subr.bf16.mxu0 0
    %450 = vmatpush1.bf16.msra.mxu0 %v439
    %451 = vmatprep.subr.bf16.mxu0 0
    %452 = vmatpush1.bf16.msra.mxu0 %v440
    %453 = vmatprep.subr.bf16.mxu0 0
    %454 = vmatpush1.bf16.msra.mxu0 %v441
    %455 = vmatprep.subr.bf16.mxu0 0
    %456 = vmatpush1.bf16.msra.mxu0 %v442
    %457 = vmatprep.subr.bf16.mxu0 0
    %458 = vmatpush1.bf16.msra.mxu0 %v443
    %459 = vmatprep.subr.bf16.mxu0 0
    %460 = vmatpush1.bf16.msra.mxu0 %v444
    %461 = vmatprep.subr.bf16.mxu0 0
    %462 = vmatpush1.bf16.msra.mxu0 0
    %463 = vmatprep.subr.bf16.mxu0 0
    %464 = vmatpush1.bf16.msra.mxu0 0
    %465 = vmatprep.subr.bf16.mxu0 0
    %466 = vmatpush1.bf16.msra.mxu0 0
    %467 = vmatprep.subr.bf16.mxu0 0
    %468 = vmatpush1.bf16.msra.mxu0 0
    %469 = vmatprep.subr.bf16.mxu0 0
    %470 = vmatpush1.bf16.msra.mxu0 0
    %471 = vmatprep.subr.bf16.mxu0 0
    %472 = vmatpush1.bf16.msra.mxu0 0
    %473 = vmatprep.subr.bf16.mxu0 0
    %474 = vmatpush1.bf16.msra.mxu0 0
    %475 = vmatprep.subr.bf16.mxu0 0
    %476 = vmatpush1.bf16.msra.mxu0 0
    %477 = vmatprep.mubr.bf16.mxu0 0
    %478 = vmatmul.mubr.bf16.gmra.mrb[0].mxu0 %v413
    %v479 = vpop.f32.mrb[0].mxu0
    %v480 = vadd.f32 0.0, %v479
    %v481 = vpop.f32.mrb[0].mxu0
    %v482 = vpop.f32.mrb[0].mxu0
    %v483 = vadd.f32 0.0, %v482
    %v484 = vpop.f32.mrb[0].mxu0
    %485 = vmatprep.mubr.bf16.mxu0 0
    %486 = vmatmul.mubr.bf16.gmra.mrb[0].mxu0 %v414
    %v487 = vpop.f32.mrb[0].mxu0
    %v488 = vadd.f32 0.0, %v487
    %v489 = vpop.f32.mrb[0].mxu0
    %v490 = vpop.f32.mrb[0].mxu0
    %v491 = vadd.f32 0.0, %v490
    %v492 = vpop.f32.mrb[0].mxu0
    %493 = vmatprep.mubr.bf16.mxu0 0
    %494 = vmatmul.mubr.bf16.gmra.mrb[0].mxu0 %v415
    %v495 = vpop.f32.mrb[0].mxu0
    %v496 = vadd.f32 0.0, %v495
    %v497 = vpop.f32.mrb[0].mxu0
    %v498 = vpop.f32.mrb[0].mxu0
    %v499 = vadd.f32 0.0, %v498
    %v500 = vpop.f32.mrb[0].mxu0
    %501 = vmatprep.mubr.bf16.mxu0 0
    %502 = vmatmul.mubr.bf16.gmra.mrb[0].mxu0 %v416
    %v503 = vpop.f32.mrb[0].mxu0
    %v504 = vadd.f32 0.0, %v503
    %v505 = vpop.f32.mrb[0].mxu0
    %v506 = vpop.f32.mrb[0].mxu0
    %v507 = vadd.f32 0.0, %v506
    %v508 = vpop.f32.mrb[0].mxu0
    %509 = vmatprep.mubr.bf16.mxu0 0
    %510 = vmatmul.mubr.bf16.gmra.mrb[0].mxu0 %v417
    %v511 = vpop.f32.mrb[0].mxu0
    %v512 = vadd.f32 0.0, %v511
    %v513 = vpop.f32.mrb[0].mxu0
    %v514 = vpop.f32.mrb[0].mxu0
    %v515 = vadd.f32 0.0, %v514
    %v516 = vpop.f32.mrb[0].mxu0
    %517 = vmatprep.mubr.bf16.mxu0 0
    %518 = vmatmul.mubr.bf16.gmra.mrb[0].mxu0 %v418
    %v519 = vpop.f32.mrb[0].mxu0
    %v520 = vadd.f32 0.0, %v519
    %v521 = vpop.f32.mrb[0].mxu0
    %v522 = vpop.f32.mrb[0].mxu0
    %v523 = vadd.f32 0.0, %v522
    %v524 = vpop.f32.mrb[0].mxu0
    %525 = vmatprep.mubr.bf16.mxu0 0
    %526 = vmatmul.mubr.bf16.gmra.mrb[0].mxu0 %v419
    %v527 = vpop.f32.mrb[0].mxu0
    %v528 = vadd.f32 0.0, %v527
    %v529 = vpop.f32.mrb[0].mxu0
    %v530 = vpop.f32.mrb[0].mxu0
    %v531 = vadd.f32 0.0, %v530
    %v532 = vpop.f32.mrb[0].mxu0
    %533 = vmatprep.mubr.bf16.mxu0 0
    %534 = vmatmul.mubr.bf16.gmra.mrb[0].mxu0 %v420
    %v535 = vpop.f32.mrb[0].mxu0
    %v536 = vadd.f32 0.0, %v535
    %v537 = vpop.f32.mrb[0].mxu0
    %v538 = vpop.f32.mrb[0].mxu0
    %v539 = vadd.f32 0.0, %v538
    %v540 = vpop.f32.mrb[0].mxu0
    %541 = vdwg.mxu0
    %v542 = vpack.c.bf16 %v483, %v480
    %v543 = vpack.c.bf16 %v491, %v488
    %v544 = vpack.c.bf16 %v499, %v496
    %v545 = vpack.c.bf16 %v507, %v504
    %v546 = vpack.c.bf16 %v515, %v512
    %v547 = vpack.c.bf16 %v523, %v520
    %v548 = vpack.c.bf16 %v531, %v528
    %v549 = vpack.c.bf16 %v539, %v536
    %v550 = vld [vmem:[%s5] sm:$0x1]
    %v552 = vlaneseq
    %v553 = vshrl.u32 %v552, 7
    %v554 = vsub.s32 0, %v553
    %v555 = vrot.slane %v550, %v554
    %557 = vmatprep.subr.bf16.mxu0 0
    %558 = vmatpush1.bf16.msra.mxu0 %v542
    %559 = vmatprep.subr.bf16.mxu0 0
    %560 = vmatpush1.bf16.msra.mxu0 %v543
    %561 = vmatprep.subr.bf16.mxu0 0
    %562 = vmatpush1.bf16.msra.mxu0 %v544
    %563 = vmatprep.subr.bf16.mxu0 0
    %564 = vmatpush1.bf16.msra.mxu0 %v545
    %565 = vmatprep.subr.bf16.mxu0 0
    %566 = vmatpush1.bf16.msra.mxu0 %v546
    %567 = vmatprep.subr.bf16.mxu0 0
    %568 = vmatpush1.bf16.msra.mxu0 %v547
    %569 = vmatprep.subr.bf16.mxu0 0
    %570 = vmatpush1.bf16.msra.mxu0 %v548
    %571 = vmatprep.subr.bf16.mxu0 0
    %572 = vmatpush1.bf16.msra.mxu0 %v549
    %573 = vmatprep.subr.bf16.mxu0 0
    %574 = vmatpush1.bf16.msra.mxu0 0
    %575 = vmatprep.subr.bf16.mxu0 0
    %576 = vmatpush1.bf16.msra.mxu0 0
    %577 = vmatprep.subr.bf16.mxu0 0
    %578 = vmatpush1.bf16.msra.mxu0 0
    %579 = vmatprep.subr.bf16.mxu0 0
    %580 = vmatpush1.bf16.msra.mxu0 0
    %581 = vmatprep.subr.bf16.mxu0 0
    %582 = vmatpush1.bf16.msra.mxu0 0
    %583 = vmatprep.subr.bf16.mxu0 0
    %584 = vmatpush1.bf16.msra.mxu0 0
    %585 = vmatprep.subr.bf16.mxu0 0
    %586 = vmatpush1.bf16.msra.mxu0 0
    %587 = vmatprep.subr.bf16.mxu0 0
    %588 = vmatpush1.bf16.msra.mxu0 0
    %589 = vmatprep.mubr.bf16.mxu0 0
    %590 = vmatmul.mubr.bf16.gmra.mrb[0].mxu0 %v268
    %v591 = vpop.f32.mrb[0].mxu0
    %v592 = vadd.f32 %v555, %v591
    %v593 = vpop.f32.mrb[0].mxu0
    %v594 = vpop.f32.mrb[0].mxu0
    %v595 = vadd.f32 %v555, %v594
    %v596 = vpop.f32.mrb[0].mxu0
    %597 = vmatprep.mubr.bf16.mxu0 0
    %598 = vmatmul.mubr.bf16.gmra.mrb[0].mxu0 %v269
    %v599 = vpop.f32.mrb[0].mxu0
    %v600 = vadd.f32 %v555, %v599
    %v601 = vpop.f32.mrb[0].mxu0
    %v602 = vpop.f32.mrb[0].mxu0
    %v603 = vadd.f32 %v555, %v602
    %v604 = vpop.f32.mrb[0].mxu0
    %605 = vmatprep.mubr.bf16.mxu0 0
    %606 = vmatmul.mubr.bf16.gmra.mrb[0].mxu0 %v270
    %v607 = vpop.f32.mrb[0].mxu0
    %v608 = vadd.f32 %v555, %v607
    %v609 = vpop.f32.mrb[0].mxu0
    %v610 = vpop.f32.mrb[0].mxu0
    %v611 = vadd.f32 %v555, %v610
    %v612 = vpop.f32.mrb[0].mxu0
    %613 = vmatprep.mubr.bf16.mxu0 0
    %614 = vmatmul.mubr.bf16.gmra.mrb[0].mxu0 %v271
    %v615 = vpop.f32.mrb[0].mxu0
    %v616 = vadd.f32 %v555, %v615
    %v617 = vpop.f32.mrb[0].mxu0
    %v618 = vpop.f32.mrb[0].mxu0
    %v619 = vadd.f32 %v555, %v618
    %v620 = vpop.f32.mrb[0].mxu0
    %621 = vmatprep.mubr.bf16.mxu0 0
    %622 = vmatmul.mubr.bf16.gmra.mrb[0].mxu0 %v272
    %v623 = vpop.f32.mrb[0].mxu0
    %v624 = vadd.f32 %v555, %v623
    %v625 = vpop.f32.mrb[0].mxu0
    %v626 = vpop.f32.mrb[0].mxu0
    %v627 = vadd.f32 %v555, %v626
    %v628 = vpop.f32.mrb[0].mxu0
    %629 = vmatprep.mubr.bf16.mxu0 0
    %630 = vmatmul.mubr.bf16.gmra.mrb[0].mxu0 %v273
    %v631 = vpop.f32.mrb[0].mxu0
    %v632 = vadd.f32 %v555, %v631
    %v633 = vpop.f32.mrb[0].mxu0
    %v634 = vpop.f32.mrb[0].mxu0
    %v635 = vadd.f32 %v555, %v634
    %v636 = vpop.f32.mrb[0].mxu0
    %637 = vmatprep.mubr.bf16.mxu0 0
    %638 = vmatmul.mubr.bf16.gmra.mrb[0].mxu0 %v274
    %v639 = vpop.f32.mrb[0].mxu0
    %v640 = vadd.f32 %v555, %v639
    %v641 = vpop.f32.mrb[0].mxu0
    %v642 = vpop.f32.mrb[0].mxu0
    %v643 = vadd.f32 %v555, %v642
    %v644 = vpop.f32.mrb[0].mxu0
    %645 = vmatprep.mubr.bf16.mxu0 0
    %646 = vmatmul.mubr.bf16.gmra.mrb[0].mxu0 %v275
    %v647 = vpop.f32.mrb[0].mxu0
    %v648 = vadd.f32 %v555, %v647
    %v649 = vpop.f32.mrb[0].mxu0
    %v650 = vpop.f32.mrb[0].mxu0
    %v651 = vadd.f32 %v555, %v650
    %v652 = vpop.f32.mrb[0].mxu0
    %653 = vdwg.mxu0
    %654 = vst [vmem:[%s9] sm:$0xff] %v592
    %655 = vst [vmem:[%s9 + $0x8] sm:$0xff] %v595
    %656 = vst [vmem:[%s9 + $0x10] sm:$0xff] %v600
    %657 = vst [vmem:[%s9 + $0x18] sm:$0xff] %v603
    %658 = vst [vmem:[%s9 + $0x20] sm:$0xff] %v608
    %659 = vst [vmem:[%s9 + $0x28] sm:$0xff] %v611
    %660 = vst [vmem:[%s9 + $0x30] sm:$0xff] %v616
    %661 = vst [vmem:[%s9 + $0x38] sm:$0xff] %v619
    %662 = vst [vmem:[%s9 + $0x40] sm:$0xff] %v624
    %663 = vst [vmem:[%s9 + $0x48] sm:$0xff] %v627
    %664 = vst [vmem:[%s9 + $0x50] sm:$0xff] %v632
    %665 = vst [vmem:[%s9 + $0x58] sm:$0xff] %v635
    %666 = vst [vmem:[%s9 + $0x60] sm:$0xff] %v640
    %667 = vst [vmem:[%s9 + $0x68] sm:$0xff] %v643
    %668 = vst [vmem:[%s9 + $0x70] sm:$0xff] %v648
    %669 = vst [vmem:[%s9 + $0x78] sm:$0xff] %v651
    %v670 = vmax.f32 %v592, 0.0
    %v671 = vmax.f32 %v595, 0.0
    %v672 = vmax.f32 %v600, 0.0
    %v673 = vmax.f32 %v603, 0.0
    %v674 = vmax.f32 %v608, 0.0
    %v675 = vmax.f32 %v611, 0.0
    %v676 = vmax.f32 %v616, 0.0
    %v677 = vmax.f32 %v619, 0.0
    %v678 = vmax.f32 %v624, 0.0
    %v679 = vmax.f32 %v627, 0.0
    %v680 = vmax.f32 %v632, 0.0
    %v681 = vmax.f32 %v635, 0.0
    %v682 = vmax.f32 %v640, 0.0
    %v683 = vmax.f32 %v643, 0.0
    %v684 = vmax.f32 %v648, 0.0
    %v685 = vmax.f32 %v651, 0.0
    %v686 = vpack.c.bf16 %v671, %v670
    %v687 = vpack.c.bf16 %v673, %v672
    %v688 = vpack.c.bf16 %v675, %v674
    %v689 = vpack.c.bf16 %v677, %v676
    %v690 = vpack.c.bf16 %v679, %v678
    %v691 = vpack.c.bf16 %v681, %v680
    %v692 = vpack.c.bf16 %v683, %v682
    %v693 = vpack.c.bf16 %v685, %v684
    %v694 = vld [vmem:[%s6] sm:$0xff]
    %v695 = vld [vmem:[%s6 + $0x8] sm:$0xff]
    %v696 = vld [vmem:[%s6 + $0x10] sm:$0xff]
    %v697 = vld [vmem:[%s6 + $0x18] sm:$0xff]
    %v698 = vld [vmem:[%s6 + $0x20] sm:$0xff]
    %v699 = vld [vmem:[%s6 + $0x28] sm:$0xff]
    %v700 = vld [vmem:[%s6 + $0x30] sm:$0xff]
    %v701 = vld [vmem:[%s6 + $0x38] sm:$0xff]
    %v702 = vld [vmem:[%s6 + $0x40] sm:$0xff]
    %v703 = vld [vmem:[%s6 + $0x48] sm:$0xff]
    %v704 = vld [vmem:[%s6 + $0x50] sm:$0xff]
    %v705 = vld [vmem:[%s6 + $0x58] sm:$0xff]
    %v706 = vld [vmem:[%s6 + $0x60] sm:$0xff]
    %v707 = vld [vmem:[%s6 + $0x68] sm:$0xff]
    %v708 = vld [vmem:[%s6 + $0x70] sm:$0xff]
    %v709 = vld [vmem:[%s6 + $0x78] sm:$0xff]
    %v710 = vpack.c.bf16 %v695, %v694
    %v711 = vpack.c.bf16 %v697, %v696
    %v712 = vpack.c.bf16 %v699, %v698
    %v713 = vpack.c.bf16 %v701, %v700
    %v714 = vpack.c.bf16 %v703, %v702
    %v715 = vpack.c.bf16 %v705, %v704
    %v716 = vpack.c.bf16 %v707, %v706
    %v717 = vpack.c.bf16 %v709, %v708
    %718 = vmatprep.subr.bf16.mxu0 0
    %719 = vmatpush1.bf16.msra.mxu0 %v710
    %720 = vmatprep.subr.bf16.mxu0 0
    %721 = vmatpush1.bf16.msra.mxu0 %v711
    %722 = vmatprep.subr.bf16.mxu0 0
    %723 = vmatpush1.bf16.msra.mxu0 %v712
    %724 = vmatprep.subr.bf16.mxu0 0
    %725 = vmatpush1.bf16.msra.mxu0 %v713
    %726 = vmatprep.subr.bf16.mxu0 0
    %727 = vmatpush1.bf16.msra.mxu0 %v714
    %728 = vmatprep.subr.bf16.mxu0 0
    %729 = vmatpush1.bf16.msra.mxu0 %v715
    %730 = vmatprep.subr.bf16.mxu0 0
    %731 = vmatpush1.bf16.msra.mxu0 %v716
    %732 = vmatprep.subr.bf16.mxu0 0
    %733 = vmatpush1.bf16.msra.mxu0 %v717
    %734 = vmatprep.subr.bf16.mxu0 0
    %735 = vmatpush1.bf16.msra.mxu0 0
    %736 = vmatprep.subr.bf16.mxu0 0
    %737 = vmatpush1.bf16.msra.mxu0 0
    %738 = vmatprep.subr.bf16.mxu0 0
    %739 = vmatpush1.bf16.msra.mxu0 0
    %740 = vmatprep.subr.bf16.mxu0 0
    %741 = vmatpush1.bf16.msra.mxu0 0
    %742 = vmatprep.subr.bf16.mxu0 0
    %743 = vmatpush1.bf16.msra.mxu0 0
    %744 = vmatprep.subr.bf16.mxu0 0
    %745 = vmatpush1.bf16.msra.mxu0 0
    %746 = vmatprep.subr.bf16.mxu0 0
    %747 = vmatpush1.bf16.msra.mxu0 0
    %748 = vmatprep.subr.bf16.mxu0 0
    %749 = vmatpush1.bf16.msra.mxu0 0
    %750 = vmatprep.mubr.bf16.mxu0 0
    %751 = vmatmul.mubr.bf16.gmra.mrb[0].mxu0 %v686
    %v752 = vpop.f32.mrb[0].mxu0
    %v753 = vadd.f32 0.0, %v752
    %v754 = vpop.f32.mrb[0].mxu0
    %v755 = vpop.f32.mrb[0].mxu0
    %v756 = vadd.f32 0.0, %v755
    %v757 = vpop.f32.mrb[0].mxu0
    %758 = vmatprep.mubr.bf16.mxu0 0
    %759 = vmatmul.mubr.bf16.gmra.mrb[0].mxu0 %v687
    %v760 = vpop.f32.mrb[0].mxu0
    %v761 = vadd.f32 0.0, %v760
    %v762 = vpop.f32.mrb[0].mxu0
    %v763 = vpop.f32.mrb[0].mxu0
    %v764 = vadd.f32 0.0, %v763
    %v765 = vpop.f32.mrb[0].mxu0
    %766 = vmatprep.mubr.bf16.mxu0 0
    %767 = vmatmul.mubr.bf16.gmra.mrb[0].mxu0 %v688
    %v768 = vpop.f32.mrb[0].mxu0
    %v769 = vadd.f32 0.0, %v768
    %v770 = vpop.f32.mrb[0].mxu0
    %v771 = vpop.f32.mrb[0].mxu0
    %v772 = vadd.f32 0.0, %v771
    %v773 = vpop.f32.mrb[0].mxu0
    %774 = vmatprep.mubr.bf16.mxu0 0
    %775 = vmatmul.mubr.bf16.gmra.mrb[0].mxu0 %v689
    %v776 = vpop.f32.mrb[0].mxu0
    %v777 = vadd.f32 0.0, %v776
    %v778 = vpop.f32.mrb[0].mxu0
    %v779 = vpop.f32.mrb[0].mxu0
    %v780 = vadd.f32 0.0, %v779
    %v781 = vpop.f32.mrb[0].mxu0
    %782 = vmatprep.mubr.bf16.mxu0 0
    %783 = vmatmul.mubr.bf16.gmra.mrb[0].mxu0 %v690
    %v784 = vpop.f32.mrb[0].mxu0
    %v785 = vadd.f32 0.0, %v784
    %v786 = vpop.f32.mrb[0].mxu0
    %v787 = vpop.f32.mrb[0].mxu0
    %v788 = vadd.f32 0.0, %v787
    %v789 = vpop.f32.mrb[0].mxu0
    %790 = vmatprep.mubr.bf16.mxu0 0
    %791 = vmatmul.mubr.bf16.gmra.mrb[0].mxu0 %v691
    %v792 = vpop.f32.mrb[0].mxu0
    %v793 = vadd.f32 0.0, %v792
    %v794 = vpop.f32.mrb[0].mxu0
    %v795 = vpop.f32.mrb[0].mxu0
    %v796 = vadd.f32 0.0, %v795
    %v797 = vpop.f32.mrb[0].mxu0
    %798 = vmatprep.mubr.bf16.mxu0 0
    %799 = vmatmul.mubr.bf16.gmra.mrb[0].mxu0 %v692
    %v800 = vpop.f32.mrb[0].mxu0
    %v801 = vadd.f32 0.0, %v800
    %v802 = vpop.f32.mrb[0].mxu0
    %v803 = vpop.f32.mrb[0].mxu0
    %v804 = vadd.f32 0.0, %v803
    %v805 = vpop.f32.mrb[0].mxu0
    %806 = vmatprep.mubr.bf16.mxu0 0
    %807 = vmatmul.mubr.bf16.gmra.mrb[0].mxu0 %v693
    %v808 = vpop.f32.mrb[0].mxu0
    %v809 = vadd.f32 0.0, %v808
    %v810 = vpop.f32.mrb[0].mxu0
    %v811 = vpop.f32.mrb[0].mxu0
    %v812 = vadd.f32 0.0, %v811
    %v813 = vpop.f32.mrb[0].mxu0
    %814 = vdwg.mxu0
    %v815 = vpack.c.bf16 %v756, %v753
    %v816 = vpack.c.bf16 %v764, %v761
    %v817 = vpack.c.bf16 %v772, %v769
    %v818 = vpack.c.bf16 %v780, %v777
    %v819 = vpack.c.bf16 %v788, %v785
    %v820 = vpack.c.bf16 %v796, %v793
    %v821 = vpack.c.bf16 %v804, %v801
    %v822 = vpack.c.bf16 %v812, %v809
    %v823 = vld [vmem:[%s7] sm:$0x1]
    %v825 = vlaneseq
    %v826 = vshrl.u32 %v825, 7
    %v827 = vsub.s32 0, %v826
    %v828 = vrot.slane %v823, %v827
    %830 = vmatprep.subr.bf16.mxu0 0
    %831 = vmatpush1.bf16.msra.mxu0 %v815
    %832 = vmatprep.subr.bf16.mxu0 0
    %833 = vmatpush1.bf16.msra.mxu0 %v816
    %834 = vmatprep.subr.bf16.mxu0 0
    %835 = vmatpush1.bf16.msra.mxu0 %v817
    %836 = vmatprep.subr.bf16.mxu0 0
    %837 = vmatpush1.bf16.msra.mxu0 %v818
    %838 = vmatprep.subr.bf16.mxu0 0
    %839 = vmatpush1.bf16.msra.mxu0 %v819
    %840 = vmatprep.subr.bf16.mxu0 0
    %841 = vmatpush1.bf16.msra.mxu0 %v820
    %842 = vmatprep.subr.bf16.mxu0 0
    %843 = vmatpush1.bf16.msra.mxu0 %v821
    %844 = vmatprep.subr.bf16.mxu0 0
    %845 = vmatpush1.bf16.msra.mxu0 %v822
    %846 = vmatprep.subr.bf16.mxu0 0
    %847 = vmatpush1.bf16.msra.mxu0 0
    %848 = vmatprep.subr.bf16.mxu0 0
    %849 = vmatpush1.bf16.msra.mxu0 0
    %850 = vmatprep.subr.bf16.mxu0 0
    %851 = vmatpush1.bf16.msra.mxu0 0
    %852 = vmatprep.subr.bf16.mxu0 0
    %853 = vmatpush1.bf16.msra.mxu0 0
    %854 = vmatprep.subr.bf16.mxu0 0
    %855 = vmatpush1.bf16.msra.mxu0 0
    %856 = vmatprep.subr.bf16.mxu0 0
    %857 = vmatpush1.bf16.msra.mxu0 0
    %858 = vmatprep.subr.bf16.mxu0 0
    %859 = vmatpush1.bf16.msra.mxu0 0
    %860 = vmatprep.subr.bf16.mxu0 0
    %861 = vmatpush1.bf16.msra.mxu0 0
    %862 = vmatprep.mubr.bf16.mxu0 0
    %863 = vmatmul.mubr.bf16.gmra.mrb[0].mxu0 %v268
    %v864 = vpop.f32.mrb[0].mxu0
    %v865 = vadd.f32 %v828, %v864
    %v866 = vpop.f32.mrb[0].mxu0
    %v867 = vpop.f32.mrb[0].mxu0
    %v868 = vadd.f32 %v828, %v867
    %v869 = vpop.f32.mrb[0].mxu0
    %870 = vmatprep.mubr.bf16.mxu0 0
    %871 = vmatmul.mubr.bf16.gmra.mrb[0].mxu0 %v269
    %v872 = vpop.f32.mrb[0].mxu0
    %v873 = vadd.f32 %v828, %v872
    %v874 = vpop.f32.mrb[0].mxu0
    %v875 = vpop.f32.mrb[0].mxu0
    %v876 = vadd.f32 %v828, %v875
    %v877 = vpop.f32.mrb[0].mxu0
    %878 = vmatprep.mubr.bf16.mxu0 0
    %879 = vmatmul.mubr.bf16.gmra.mrb[0].mxu0 %v270
    %v880 = vpop.f32.mrb[0].mxu0
    %v881 = vadd.f32 %v828, %v880
    %v882 = vpop.f32.mrb[0].mxu0
    %v883 = vpop.f32.mrb[0].mxu0
    %v884 = vadd.f32 %v828, %v883
    %v885 = vpop.f32.mrb[0].mxu0
    %886 = vmatprep.mubr.bf16.mxu0 0
    %887 = vmatmul.mubr.bf16.gmra.mrb[0].mxu0 %v271
    %v888 = vpop.f32.mrb[0].mxu0
    %v889 = vadd.f32 %v828, %v888
    %v890 = vpop.f32.mrb[0].mxu0
    %v891 = vpop.f32.mrb[0].mxu0
    %v892 = vadd.f32 %v828, %v891
    %v893 = vpop.f32.mrb[0].mxu0
    %894 = vmatprep.mubr.bf16.mxu0 0
    %895 = vmatmul.mubr.bf16.gmra.mrb[0].mxu0 %v272
    %v896 = vpop.f32.mrb[0].mxu0
    %v897 = vadd.f32 %v828, %v896
    %v898 = vpop.f32.mrb[0].mxu0
    %v899 = vpop.f32.mrb[0].mxu0
    %v900 = vadd.f32 %v828, %v899
    %v901 = vpop.f32.mrb[0].mxu0
    %902 = vmatprep.mubr.bf16.mxu0 0
    %903 = vmatmul.mubr.bf16.gmra.mrb[0].mxu0 %v273
    %v904 = vpop.f32.mrb[0].mxu0
    %v905 = vadd.f32 %v828, %v904
    %v906 = vpop.f32.mrb[0].mxu0
    %v907 = vpop.f32.mrb[0].mxu0
    %v908 = vadd.f32 %v828, %v907
    %v909 = vpop.f32.mrb[0].mxu0
    %910 = vmatprep.mubr.bf16.mxu0 0
    %911 = vmatmul.mubr.bf16.gmra.mrb[0].mxu0 %v274
    %v912 = vpop.f32.mrb[0].mxu0
    %v913 = vadd.f32 %v828, %v912
    %v914 = vpop.f32.mrb[0].mxu0
    %v915 = vpop.f32.mrb[0].mxu0
    %v916 = vadd.f32 %v828, %v915
    %v917 = vpop.f32.mrb[0].mxu0
    %918 = vmatprep.mubr.bf16.mxu0 0
    %919 = vmatmul.mubr.bf16.gmra.mrb[0].mxu0 %v275
    %v920 = vpop.f32.mrb[0].mxu0
    %v921 = vadd.f32 %v828, %v920
    %v922 = vpop.f32.mrb[0].mxu0
    %v923 = vpop.f32.mrb[0].mxu0
    %v924 = vadd.f32 %v828, %v923
    %v925 = vpop.f32.mrb[0].mxu0
    %926 = vdwg.mxu0
    %927 = vst [vmem:[%s10] sm:$0xff] %v865
    %928 = vst [vmem:[%s10 + $0x8] sm:$0xff] %v868
    %929 = vst [vmem:[%s10 + $0x10] sm:$0xff] %v873
    %930 = vst [vmem:[%s10 + $0x18] sm:$0xff] %v876
    %931 = vst [vmem:[%s10 + $0x20] sm:$0xff] %v881
    %932 = vst [vmem:[%s10 + $0x28] sm:$0xff] %v884
    %933 = vst [vmem:[%s10 + $0x30] sm:$0xff] %v889
    %934 = vst [vmem:[%s10 + $0x38] sm:$0xff] %v892
    %935 = vst [vmem:[%s10 + $0x40] sm:$0xff] %v897
    %936 = vst [vmem:[%s10 + $0x48] sm:$0xff] %v900
    %937 = vst [vmem:[%s10 + $0x50] sm:$0xff] %v905
    %938 = vst [vmem:[%s10 + $0x58] sm:$0xff] %v908
    %939 = vst [vmem:[%s10 + $0x60] sm:$0xff] %v913
    %940 = vst [vmem:[%s10 + $0x68] sm:$0xff] %v916
    %941 = vst [vmem:[%s10 + $0x70] sm:$0xff] %v921
    %942 = vst [vmem:[%s10 + $0x78] sm:$0xff] %v924
    %v943 = vlaneseq
    %v944 = vand.u32 %v943, 127
    %vm945 = vcmp.lt.s32.totalorder %v944, 8
    %v946 = vsel %vm945, %v865, -1e+30
    %v947 = vsel %vm945, %v868, -1e+30
    %v948 = vsel %vm945, %v873, -1e+30
    %v949 = vsel %vm945, %v876, -1e+30
    %v950 = vsel %vm945, %v881, -1e+30
    %v951 = vsel %vm945, %v884, -1e+30
    %v952 = vsel %vm945, %v889, -1e+30
    %v953 = vsel %vm945, %v892, -1e+30
    %v954 = vsel %vm945, %v897, -1e+30
    %v955 = vsel %vm945, %v900, -1e+30
    %v956 = vsel %vm945, %v905, -1e+30
    %v957 = vsel %vm945, %v908, -1e+30
    %v958 = vsel %vm945, %v913, -1e+30
    %v959 = vsel %vm945, %v916, -1e+30
    %v960 = vsel %vm945, %v921, -1e+30
    %v961 = vsel %vm945, %v924, -1e+30
    %962 = vmax.xlane.f32.xlu0 %v946
    %v963 = vpop.xlane.xlu0 %962
    %964 = vmax.xlane.f32.xlu0 %v947
    %v965 = vpop.xlane.xlu0 %964
    %966 = vmax.xlane.f32.xlu0 %v948
    %v967 = vpop.xlane.xlu0 %966
    %968 = vmax.xlane.f32.xlu0 %v949
    %v969 = vpop.xlane.xlu0 %968
    %970 = vmax.xlane.f32.xlu0 %v950
    %v971 = vpop.xlane.xlu0 %970
    %972 = vmax.xlane.f32.xlu0 %v951
    %v973 = vpop.xlane.xlu0 %972
    %974 = vmax.xlane.f32.xlu0 %v952
    %v975 = vpop.xlane.xlu0 %974
    %976 = vmax.xlane.f32.xlu0 %v953
    %v977 = vpop.xlane.xlu0 %976
    %978 = vmax.xlane.f32.xlu0 %v954
    %v979 = vpop.xlane.xlu0 %978
    %980 = vmax.xlane.f32.xlu0 %v955
    %v981 = vpop.xlane.xlu0 %980
    %982 = vmax.xlane.f32.xlu0 %v956
    %v983 = vpop.xlane.xlu0 %982
    %984 = vmax.xlane.f32.xlu0 %v957
    %v985 = vpop.xlane.xlu0 %984
    %986 = vmax.xlane.f32.xlu0 %v958
    %v987 = vpop.xlane.xlu0 %986
    %988 = vmax.xlane.f32.xlu0 %v959
    %v989 = vpop.xlane.xlu0 %988
    %990 = vmax.xlane.f32.xlu0 %v960
    %v991 = vpop.xlane.xlu0 %990
    %992 = vmax.xlane.f32.xlu0 %v961
    %v993 = vpop.xlane.xlu0 %992
    %v994 = vsub.f32 %v946, %v963
    %v995 = vsub.f32 %v947, %v965
    %v996 = vsub.f32 %v948, %v967
    %v997 = vsub.f32 %v949, %v969
    %v998 = vsub.f32 %v950, %v971
    %v999 = vsub.f32 %v951, %v973
    %v1000 = vsub.f32 %v952, %v975
    %v1001 = vsub.f32 %v953, %v977
    %v1002 = vsub.f32 %v954, %v979
    %v1003 = vsub.f32 %v955, %v981
    %v1004 = vsub.f32 %v956, %v983
    %v1005 = vsub.f32 %v957, %v985
    %v1006 = vsub.f32 %v958, %v987
    %v1007 = vsub.f32 %v959, %v989
    %v1008 = vsub.f32 %v960, %v991
    %v1009 = vsub.f32 %v961, %v993
    %v1010 = vmul.f32 %v994, 1.442695
    %v1011 = vpow.pop %v1010
    %v1012 = vmul.f32 %v995, 1.442695
    %v1013 = vpow.pop %v1012
    %v1014 = vmul.f32 %v996, 1.442695
    %v1015 = vpow.pop %v1014
    %v1016 = vmul.f32 %v997, 1.442695
    %v1017 = vpow.pop %v1016
    %v1018 = vmul.f32 %v998, 1.442695
    %v1019 = vpow.pop %v1018
    %v1020 = vmul.f32 %v999, 1.442695
    %v1021 = vpow.pop %v1020
    %v1022 = vmul.f32 %v1000, 1.442695
    %v1023 = vpow.pop %v1022
    %v1024 = vmul.f32 %v1001, 1.442695
    %v1025 = vpow.pop %v1024
    %v1026 = vmul.f32 %v1002, 1.442695
    %v1027 = vpow.pop %v1026
    %v1028 = vmul.f32 %v1003, 1.442695
    %v1029 = vpow.pop %v1028
    %v1030 = vmul.f32 %v1004, 1.442695
    %v1031 = vpow.pop %v1030
    %v1032 = vmul.f32 %v1005, 1.442695
    %v1033 = vpow.pop %v1032
    %v1034 = vmul.f32 %v1006, 1.442695
    %v1035 = vpow.pop %v1034
    %v1036 = vmul.f32 %v1007, 1.442695
    %v1037 = vpow.pop %v1036
    %v1038 = vmul.f32 %v1008, 1.442695
    %v1039 = vpow.pop %v1038
    %v1040 = vmul.f32 %v1009, 1.442695
    %v1041 = vpow.pop %v1040
    %1042 = vadd.xlane.f32.xlu0 %v1011
    %v1043 = vpop.xlane.xlu0 %1042
    %1044 = vadd.xlane.f32.xlu0 %v1013
    %v1045 = vpop.xlane.xlu0 %1044
    %1046 = vadd.xlane.f32.xlu0 %v1015
    %v1047 = vpop.xlane.xlu0 %1046
    %1048 = vadd.xlane.f32.xlu0 %v1017
    %v1049 = vpop.xlane.xlu0 %1048
    %1050 = vadd.xlane.f32.xlu0 %v1019
    %v1051 = vpop.xlane.xlu0 %1050
    %1052 = vadd.xlane.f32.xlu0 %v1021
    %v1053 = vpop.xlane.xlu0 %1052
    %1054 = vadd.xlane.f32.xlu0 %v1023
    %v1055 = vpop.xlane.xlu0 %1054
    %1056 = vadd.xlane.f32.xlu0 %v1025
    %v1057 = vpop.xlane.xlu0 %1056
    %1058 = vadd.xlane.f32.xlu0 %v1027
    %v1059 = vpop.xlane.xlu0 %1058
    %1060 = vadd.xlane.f32.xlu0 %v1029
    %v1061 = vpop.xlane.xlu0 %1060
    %1062 = vadd.xlane.f32.xlu0 %v1031
    %v1063 = vpop.xlane.xlu0 %1062
    %1064 = vadd.xlane.f32.xlu0 %v1033
    %v1065 = vpop.xlane.xlu0 %1064
    %1066 = vadd.xlane.f32.xlu0 %v1035
    %v1067 = vpop.xlane.xlu0 %1066
    %1068 = vadd.xlane.f32.xlu0 %v1037
    %v1069 = vpop.xlane.xlu0 %1068
    %1070 = vadd.xlane.f32.xlu0 %v1039
    %v1071 = vpop.xlane.xlu0 %1070
    %1072 = vadd.xlane.f32.xlu0 %v1041
    %v1073 = vpop.xlane.xlu0 %1072
    %v1074 = vlog2.pop %v1043
    %v1075 = vmul.f32 %v1074, 0.6931472
    %v1076 = vlog2.pop %v1045
    %v1077 = vmul.f32 %v1076, 0.6931472
    %v1078 = vlog2.pop %v1047
    %v1079 = vmul.f32 %v1078, 0.6931472
    %v1080 = vlog2.pop %v1049
    %v1081 = vmul.f32 %v1080, 0.6931472
    %v1082 = vlog2.pop %v1051
    %v1083 = vmul.f32 %v1082, 0.6931472
    %v1084 = vlog2.pop %v1053
    %v1085 = vmul.f32 %v1084, 0.6931472
    %v1086 = vlog2.pop %v1055
    %v1087 = vmul.f32 %v1086, 0.6931472
    %v1088 = vlog2.pop %v1057
    %v1089 = vmul.f32 %v1088, 0.6931472
    %v1090 = vlog2.pop %v1059
    %v1091 = vmul.f32 %v1090, 0.6931472
    %v1092 = vlog2.pop %v1061
    %v1093 = vmul.f32 %v1092, 0.6931472
    %v1094 = vlog2.pop %v1063
    %v1095 = vmul.f32 %v1094, 0.6931472
    %v1096 = vlog2.pop %v1065
    %v1097 = vmul.f32 %v1096, 0.6931472
    %v1098 = vlog2.pop %v1067
    %v1099 = vmul.f32 %v1098, 0.6931472
    %v1100 = vlog2.pop %v1069
    %v1101 = vmul.f32 %v1100, 0.6931472
    %v1102 = vlog2.pop %v1071
    %v1103 = vmul.f32 %v1102, 0.6931472
    %v1104 = vlog2.pop %v1073
    %v1105 = vmul.f32 %v1104, 0.6931472
    %v1106 = vsub.f32 %v994, %v1075
    %v1107 = vsub.f32 %v995, %v1077
    %v1108 = vsub.f32 %v996, %v1079
    %v1109 = vsub.f32 %v997, %v1081
    %v1110 = vsub.f32 %v998, %v1083
    %v1111 = vsub.f32 %v999, %v1085
    %v1112 = vsub.f32 %v1000, %v1087
    %v1113 = vsub.f32 %v1001, %v1089
    %v1114 = vsub.f32 %v1002, %v1091
    %v1115 = vsub.f32 %v1003, %v1093
    %v1116 = vsub.f32 %v1004, %v1095
    %v1117 = vsub.f32 %v1005, %v1097
    %v1118 = vsub.f32 %v1006, %v1099
    %v1119 = vsub.f32 %v1007, %v1101
    %v1120 = vsub.f32 %v1008, %v1103
    %v1121 = vsub.f32 %v1009, %v1105
    %1122 = vst [vmem:[%s11] sm:$0xff] %v1106
    %1123 = vst [vmem:[%s11 + $0x8] sm:$0xff] %v1107
    %1124 = vst [vmem:[%s11 + $0x10] sm:$0xff] %v1108
    %1125 = vst [vmem:[%s11 + $0x18] sm:$0xff] %v1109
    %1126 = vst [vmem:[%s11 + $0x20] sm:$0xff] %v1110
    %1127 = vst [vmem:[%s11 + $0x28] sm:$0xff] %v1111
    %1128 = vst [vmem:[%s11 + $0x30] sm:$0xff] %v1112
    %1129 = vst [vmem:[%s11 + $0x38] sm:$0xff] %v1113
    %1130 = vst [vmem:[%s11 + $0x40] sm:$0xff] %v1114
    %1131 = vst [vmem:[%s11 + $0x48] sm:$0xff] %v1115
    %1132 = vst [vmem:[%s11 + $0x50] sm:$0xff] %v1116
    %1133 = vst [vmem:[%s11 + $0x58] sm:$0xff] %v1117
    %1134 = vst [vmem:[%s11 + $0x60] sm:$0xff] %v1118
    %1135 = vst [vmem:[%s11 + $0x68] sm:$0xff] %v1119
    %1136 = vst [vmem:[%s11 + $0x70] sm:$0xff] %v1120
    %1137 = vst [vmem:[%s11 + $0x78] sm:$0xff] %v1121
    // Predicated region
    $region42: #{gcn_pia2_forward.1} parent=1 // pred_check
      _
    $region43: #{gcn_pia2_forward.1} parent=1 // pred_check_branch
      %1139 = sbr.rel (0) target = $region45
    $region44: #{gcn_pia2_forward.1} parent=1 // pred_region
      _
    $region45: #{gcn_pia2_forward.1} parent=1 // pred_fallthru
      _
    // Predicated region
    $region46: #{gcn_pia2_forward.1} parent=1 // pred_check
      _
    $region47: #{gcn_pia2_forward.1} parent=1 // pred_check_branch
      %1141 = sbr.rel (0) target = $region49
    $region48: #{gcn_pia2_forward.1} parent=1 // pred_region
      _
    $region49: #{gcn_pia2_forward.1} parent=1 // pred_fallthru
      _
    // Predicated region
    $region50: #{gcn_pia2_forward.1} parent=1 // pred_check
      _
    $region51: #{gcn_pia2_forward.1} parent=1 // pred_check_branch
      %1143 = sbr.rel (0) target = $region53
    $region52: #{gcn_pia2_forward.1} parent=1 // pred_region
      _
    $region53: #{gcn_pia2_forward.1} parent=1 // pred_fallthru
      _
    // Predicated region
    $region54: #{gcn_pia2_forward.1} parent=1 // pred_check
      _
    $region55: #{gcn_pia2_forward.1} parent=1 // pred_check_branch
      %1145 = sbr.rel (0) target = $region57
    $region56: #{gcn_pia2_forward.1} parent=1 // pred_region
      _
    $region57: #{gcn_pia2_forward.1} parent=1 // pred_fallthru
      _
    // Predicated region
    $region58: #{gcn_pia2_forward.1} parent=1 // pred_check
      _
    $region59: #{gcn_pia2_forward.1} parent=1 // pred_check_branch
      %1147 = sbr.rel (0) target = $region61
    $region60: #{gcn_pia2_forward.1} parent=1 // pred_region
      _
    $region61: #{gcn_pia2_forward.1} parent=1 // pred_fallthru
      _
    // Predicated region
    $region62: #{gcn_pia2_forward.1} parent=1 // pred_check
      _
    $region63: #{gcn_pia2_forward.1} parent=1 // pred_check_branch
      %1149 = sbr.rel (0) target = $region65
    $region64: #{gcn_pia2_forward.1} parent=1 // pred_region
      _
    $region65: #{gcn_pia2_forward.1} parent=1 // pred_fallthru
      _
    // Predicated region
    $region66: #{gcn_pia2_forward.1} parent=1 // pred_check
      _
    $region67: #{gcn_pia2_forward.1} parent=1 // pred_check_branch
      %1151 = sbr.rel (0) target = $region69
    $region68: #{gcn_pia2_forward.1} parent=1 // pred_region
      _
    $region69: #{gcn_pia2_forward.1} parent=1 // pred_fallthru
      _
    // Predicated region
    $region70: #{gcn_pia2_forward.1} parent=1 // pred_check
      _
    $region71: #{gcn_pia2_forward.1} parent=1 // pred_check_branch
      %1153 = sbr.rel (0) target = $region73
    $region72: #{gcn_pia2_forward.1} parent=1 // pred_region
      _
    $region73: #{gcn_pia2_forward.1} parent=1 // pred_fallthru
      _
    %1154 = vsyncpa [#allocation3], 1
    %1155 = vsyncpa [#allocation5], 1

</llo_original>
